<compile_context>
chip_gen: v5e
topology: v5e:2x2
jax: 0.10.0
libtpu: 0.0.40
codegen_flags: <defaults>
</compile_context>

<pallas_src>
import math

import jax
import jax.numpy as jnp
from jax.experimental import pallas as pl
from jax.experimental.pallas import tpu as pltpu


def _round_up(x, m):
    return ((x + m - 1) // m) * m


def _linear_kernel(x_ref, w_ref, b_ref, o_ref):
    # x_ref: (tm, K) token tile; w_ref: (K, tn) weight tile; b_ref: (1, tn) bias
    acc = jnp.dot(x_ref[...], w_ref[...], preferred_element_type=jnp.float32)
    o_ref[...] = (acc + b_ref[...]).astype(o_ref.dtype)


def _pick_row_tile(M, tm_default):
    """Row tile: big for throughput, 256-aligned, and >=2 tiles for mid-size M
    so v7x's two TensorCores both get work."""
    if M > tm_default:
        return tm_default
    if M > 512:
        # Split into (at least) two tiles, 256-aligned.
        half = -(-M // 2)
        return max(256, _round_up(half, 256))
    # Tiny input: single tile, just respect the 8-sublane granule.
    return max(8, _round_up(M, 8))


def _vmem_budget():
    """~75% of physical VMEM per core; conservative fallback for v7x (64 MiB)."""
    try:
        cap = pltpu.get_tpu_info().vmem_capacity_bytes
        return int(0.75 * cap)
    except Exception:
        return 48 * 1024 * 1024


def ctc_classifier_mel(dub, weight_t, bias):
    """dub: (B, T, 256) float32; weight_t: (256, C); bias: (C,). Returns (B, T, C)."""
    B, T, K = dub.shape
    C = weight_t.shape[1]
    M = B * T

    x = dub.reshape(M, K)
    b2d = bias.reshape(1, C)

    # --- class-axis tiling --------------------------------------------------
    # Small/medium C (the CTC norm): single N tile == full class axis.
    # Block dim equal to the full array dim is legal even when C % 128 != 0;
    # weight + bias then have constant block indices and stay VMEM-resident.
    if C <= 4096:
        tn_eff = C
        grid_n = 1
        # Keep the double-buffered (x + out + W) footprint moderate.
        if C <= 1024:
            tm_default = 2048
        elif C <= 2048:
            tm_default = 1024
        else:
            tm_default = 512
    else:
        tn_eff = 512
        grid_n = pl.cdiv(C, tn_eff)
        tm_default = 1024

    # --- row-axis tiling (no padding; ragged last tile is clipped by Pallas) -
    tm_eff = _pick_row_tile(M, tm_default)
    grid_m = pl.cdiv(M, tm_eff)

    grid = (grid_m, grid_n)

    # --- VMEM budget ---------------------------------------------------------
    itemsize = jnp.dtype(dub.dtype).itemsize
    # double-buffered x, w, bias, out tiles
    tile_bytes = 2 * (tm_eff * K + K * tn_eff + tn_eff + tm_eff * tn_eff) * itemsize
    budget = _vmem_budget()
    vmem_limit = int(min(max(2 * tile_bytes, 32 * 1024 * 1024), budget))
    vmem_limit = max(vmem_limit, tile_bytes + 4 * 1024 * 1024)

    out = pl.pallas_call(
        _linear_kernel,
        out_shape=jax.ShapeDtypeStruct((M, C), dub.dtype),
        grid_spec=pltpu.PrefetchScalarGridSpec(
            num_scalar_prefetch=0,
            grid=grid,
            in_specs=[
                pl.BlockSpec((tm_eff, K), lambda i, j: (i, 0)),   # token tile
                pl.BlockSpec((K, tn_eff), lambda i, j: (0, j)),   # weight (resident if grid_n==1)
                pl.BlockSpec((1, tn_eff), lambda i, j: (0, j)),   # bias
            ],
            out_specs=pl.BlockSpec((tm_eff, tn_eff), lambda i, j: (i, j)),
        ),
        compiler_params=pltpu.CompilerParams(
            dimension_semantics=("parallel", "parallel"),
            vmem_limit_bytes=vmem_limit,
        ),
    )(x, weight_t, b2d)

    return out.reshape(B, T, C)


def init_params(key, num_classes, in_features=256):
    # Deterministic init mimicking nn.Linear default: U(-1/sqrt(in), 1/sqrt(in))
    kw, kb = jax.random.split(key)
    bound = 1.0 / math.sqrt(in_features)
    # PyTorch weight is (out, in); we store its transpose (in, out) for the kernel.
    weight_t = jax.random.uniform(
        kw, (in_features, num_classes), jnp.float32, minval=-bound, maxval=bound
    )
    bias = jax.random.uniform(
        kb, (num_classes,), jnp.float32, minval=-bound, maxval=bound
    )
    return weight_t, bias


if __name__ == "__main__":
    key = jax.random.PRNGKey(0)
    k_in, k_p = jax.random.split(key)

    B, T, IN, NUM_CLASSES = 2, 8, 256, 32
    dub = jax.random.normal(k_in, (B, T, IN), jnp.float32)
    weight_t, bias = init_params(k_p, NUM_CLASSES, IN)

    out = ctc_classifier_mel(dub, weight_t, bias)
    out = jax.block_until_ready(out)

    # Reference check in plain JAX (same semantics as the PyTorch module).
    ref = (dub.reshape(-1, IN) @ weight_t + bias).reshape(B, T, NUM_CLASSES)
    assert out.shape == (B, T, NUM_CLASSES)
    assert jnp.allclose(out, ref, atol=1e-5, rtol=1e-5)

    print("KERNEL_OK")
</pallas_src>

<mosaic_0001>
module attributes {stable_mosaic.version = 11 : i64} {
  func.func @_linear_kernel(%arg0: i32, %arg1: i32, %arg2: memref<16x256xf32, #tpu.memory_space<vmem>>, %arg3: memref<256x32xf32, #tpu.memory_space<vmem>>, %arg4: memref<1x32xf32, #tpu.memory_space<vmem>>, %arg5: memref<16x32xf32, #tpu.memory_space<vmem>>) attributes {dimension_semantics = [#tpu.dimension_semantics<parallel>, #tpu.dimension_semantics<parallel>], iteration_bounds = array<i64: 1, 1>, scalar_prefetch = 0 : i64, scratch_operands = 0 : i64, tpu.core_type = #tpu.core_type<tc>, window_params = [{transform_indices = @transform_0, window_bounds = array<i64: 16, 256>}, {transform_indices = @transform_1, window_bounds = array<i64: 256, 32>}, {transform_indices = @transform_2, window_bounds = array<i64: 1, 32>}, {transform_indices = @transform_3, window_bounds = array<i64: 16, 32>}]} {
    %c0 = arith.constant 0 : index
    %c0_0 = arith.constant 0 : index
    %0 = vector.load %arg2[%c0, %c0_0] : memref<16x256xf32, #tpu.memory_space<vmem>>, vector<16x256xf32>
    %c0_1 = arith.constant 0 : index
    %c0_2 = arith.constant 0 : index
    %1 = vector.load %arg3[%c0_1, %c0_2] : memref<256x32xf32, #tpu.memory_space<vmem>>, vector<256x32xf32>
    %cst = arith.constant dense<0.000000e+00> : vector<16x32xf32>
    %2 = tpu.matmul %0, %1, %cst {dimension_numbers = #tpu.dot_dimension_numbers<[1], [0], [0], [1], [0, 0, 1, 1], [], []>} : vector<16x256xf32>, vector<256x32xf32>, vector<16x32xf32> -> vector<16x32xf32>
    %c0_3 = arith.constant 0 : index
    %c0_4 = arith.constant 0 : index
    %3 = vector.load %arg4[%c0_3, %c0_4] : memref<1x32xf32, #tpu.memory_space<vmem>>, vector<1x32xf32>
    %4 = vector.broadcast %3 : vector<1x32xf32> to vector<16x32xf32>
    %5 = arith.addf %2, %4 : vector<16x32xf32>
    %c0_5 = arith.constant 0 : index
    %c0_6 = arith.constant 0 : index
    %6 = vector.load %arg5[%c0_5, %c0_6] : memref<16x32xf32, #tpu.memory_space<vmem>>, vector<16x32xf32>
    tpu.vector_store %arg5[%c0_5, %c0_6], %5 {strides = array<i32>} : memref<16x32xf32, #tpu.memory_space<vmem>>, vector<16x32xf32>,
    return
  }
  func.func @transform_0(%arg0: i32, %arg1: i32) -> (i32, i32) {
    %c0_i32 = arith.constant 0 : i32
    %c0_i32_0 = arith.constant 0 : i32
    return %arg0, %c0_i32 : i32, i32
  }
  func.func @transform_1(%arg0: i32, %arg1: i32) -> (i32, i32) {
    %c0_i32 = arith.constant 0 : i32
    %c0_i32_0 = arith.constant 0 : i32
    return %c0_i32, %arg1 : i32, i32
  }
  func.func @transform_2(%arg0: i32, %arg1: i32) -> (i32, i32) {
    %c0_i32 = arith.constant 0 : i32
    %c0_i32_0 = arith.constant 0 : i32
    return %c0_i32, %arg1 : i32, i32
  }
  func.func @transform_3(%arg0: i32, %arg1: i32) -> (i32, i32) {
    %c0_i32 = arith.constant 0 : i32
    return %arg0, %arg1 : i32, i32
  }
}

</mosaic_0001>

<llo_original>
// kernel: tpu_custom_call.1
$region0: #{tpu_custom_call.1}
  #allocation0 [shape = 'u32[]', space=smem, size = 0x4, offset = 0x4, fixed_abs, tag = 'smem constant byte address 0x4 - core index']
  #allocation1 [shape = 'u32[72,128]{1,0:T(1,128)}', space=vmem, size = 0x9000, scoped, tag = 'internal scratch']
  %s0 = inlined_call_operand.vmem [shape: f32[16,256], index: 0, kind: input, shape index: {}]
  %s1 = inlined_call_operand.vmem [shape: f32[256,32], index: 1, kind: input, shape index: {}]
  %s2 = inlined_call_operand.vmem [shape: f32[1,32], index: 2, kind: input, shape index: {}]
  %s3 = inlined_call_operand.hbm [shape: f32[16,32], index: 3, kind: output, shape index: {}]
  %s4 = sld [smem:[#allocation0]]
  $region22: #{tpu_custom_call.1} parent=0
    _
  %s6 = ssub.s32 1, %s4
  %s7 = scalar_select 0, %s6, %s4
  $region1: #{tpu_custom_call.1} parent=0
    #allocation2 [shape = 'u8[8192]{0}', space=vmem, size = 0x2000, scoped, tag = 'output window, operand 0, single buffered']
    #allocation3 [shape = 's32[1]{0}', space=sflag, size = 0x4, scoped, tag = 'scoped memory for tpu_custom_call.1']
    %8 = vsyncpa [#allocation3], 0
    // Predicated region
    $region2: #{tpu_custom_call.1} parent=1 // pred_check
      _
    $region3: #{tpu_custom_call.1} parent=1 // pred_check_branch
      %10 = sbr.rel (0) target = $region5
    $region4: #{tpu_custom_call.1} parent=1 // pred_region
      _
    $region5: #{tpu_custom_call.1} parent=1 // pred_fallthru
      _
    // Predicated region
    $region6: #{tpu_custom_call.1} parent=1 // pred_check
      _
    $region7: #{tpu_custom_call.1} parent=1 // pred_check_branch
      %12 = sbr.rel (0) target = $region9
    $region8: #{tpu_custom_call.1} parent=1 // pred_region
      _
    $region9: #{tpu_custom_call.1} parent=1 // pred_fallthru
      _
    // Predicated region
    $region10: #{tpu_custom_call.1} parent=1 // pred_check
      _
    $region11: #{tpu_custom_call.1} parent=1 // pred_check_branch
      %14 = sbr.rel (0) target = $region13
    $region12: #{tpu_custom_call.1} parent=1 // pred_region
      _
    $region13: #{tpu_custom_call.1} parent=1 // pred_fallthru
      _
    %v15 = vld [vmem:[%s0] sm:$0xff]
    %v16 = vld [vmem:[%s0 + $0x8] sm:$0xff]
    %v17 = vld [vmem:[%s0 + $0x10] sm:$0xff]
    %v18 = vld [vmem:[%s0 + $0x18] sm:$0xff]
    %v19 = vld [vmem:[%s1] sm:$0xff]
    %v20 = vld [vmem:[%s1 + $0x8] sm:$0xff]
    %v21 = vld [vmem:[%s1 + $0x10] sm:$0xff]
    %v22 = vld [vmem:[%s1 + $0x18] sm:$0xff]
    %v23 = vld [vmem:[%s1 + $0x20] sm:$0xff]
    %v24 = vld [vmem:[%s1 + $0x28] sm:$0xff]
    %v25 = vld [vmem:[%s1 + $0x30] sm:$0xff]
    %v26 = vld [vmem:[%s1 + $0x38] sm:$0xff]
    %v27 = vld [vmem:[%s1 + $0x40] sm:$0xff]
    %v28 = vld [vmem:[%s1 + $0x48] sm:$0xff]
    %v29 = vld [vmem:[%s1 + $0x50] sm:$0xff]
    %v30 = vld [vmem:[%s1 + $0x58] sm:$0xff]
    %v31 = vld [vmem:[%s1 + $0x60] sm:$0xff]
    %v32 = vld [vmem:[%s1 + $0x68] sm:$0xff]
    %v33 = vld [vmem:[%s1 + $0x70] sm:$0xff]
    %v34 = vld [vmem:[%s1 + $0x78] sm:$0xff]
    %v35 = vld [vmem:[%s1 + $0x80] sm:$0xff]
    %v36 = vld [vmem:[%s1 + $0x88] sm:$0xff]
    %v37 = vld [vmem:[%s1 + $0x90] sm:$0xff]
    %v38 = vld [vmem:[%s1 + $0x98] sm:$0xff]
    %v39 = vld [vmem:[%s1 + $0xa0] sm:$0xff]
    %v40 = vld [vmem:[%s1 + $0xa8] sm:$0xff]
    %v41 = vld [vmem:[%s1 + $0xb0] sm:$0xff]
    %v42 = vld [vmem:[%s1 + $0xb8] sm:$0xff]
    %v43 = vld [vmem:[%s1 + $0xc0] sm:$0xff]
    %v44 = vld [vmem:[%s1 + $0xc8] sm:$0xff]
    %v45 = vld [vmem:[%s1 + $0xd0] sm:$0xff]
    %v46 = vld [vmem:[%s1 + $0xd8] sm:$0xff]
    %v47 = vld [vmem:[%s1 + $0xe0] sm:$0xff]
    %v48 = vld [vmem:[%s1 + $0xe8] sm:$0xff]
    %v49 = vld [vmem:[%s1 + $0xf0] sm:$0xff]
    %v50 = vld [vmem:[%s1 + $0xf8] sm:$0xff]
    %v51 = vld [vmem:[%s2] sm:$0x1]
    %v53 = vperm.slane %v51, 0
    %55 = vmatpush.msra.mxu0 %v34
    %56 = vmatpush.msra.mxu0 %v33
    %57 = vmatpush.msra.mxu0 %v32
    %58 = vmatpush.msra.mxu0 %v31
    %59 = vmatpush.msra.mxu0 %v30
    %60 = vmatpush.msra.mxu0 %v29
    %61 = vmatpush.msra.mxu0 %v28
    %62 = vmatpush.msra.mxu0 %v27
    %63 = vmatpush.msra.mxu0 %v26
    %64 = vmatpush.msra.mxu0 %v25
    %65 = vmatpush.msra.mxu0 %v24
    %66 = vmatpush.msra.mxu0 %v23
    %67 = vmatpush.msra.mxu0 %v22
    %68 = vmatpush.msra.mxu0 %v21
    %69 = vmatpush.msra.mxu0 %v20
    %70 = vmatpush.msra.mxu0 %v19
    %71 = vmatmul.f32.gmra.mxu0 %v15
    %v72 = vpop.f32.mrf.mxu0
    %v73 = vadd.f32 %v53, %v72
    %74 = vmatmul.f32.gmra.mxu0 %v17
    %v75 = vpop.f32.mrf.mxu0
    %v76 = vadd.f32 %v53, %v75
    %77 = vdwg.mxu0
    %78 = vmatpush.msra.mxu0 %v50
    %79 = vmatpush.msra.mxu0 %v49
    %80 = vmatpush.msra.mxu0 %v48
    %81 = vmatpush.msra.mxu0 %v47
    %82 = vmatpush.msra.mxu0 %v46
    %83 = vmatpush.msra.mxu0 %v45
    %84 = vmatpush.msra.mxu0 %v44
    %85 = vmatpush.msra.mxu0 %v43
    %86 = vmatpush.msra.mxu0 %v42
    %87 = vmatpush.msra.mxu0 %v41
    %88 = vmatpush.msra.mxu0 %v40
    %89 = vmatpush.msra.mxu0 %v39
    %90 = vmatpush.msra.mxu0 %v38
    %91 = vmatpush.msra.mxu0 %v37
    %92 = vmatpush.msra.mxu0 %v36
    %93 = vmatpush.msra.mxu0 %v35
    %94 = vmatmul.f32.gmra.mxu0 %v16
    %v95 = vpop.f32.mrf.mxu0
    %v96 = vadd.f32 %v73, %v95
    %97 = vmatmul.f32.gmra.mxu0 %v18
    %v98 = vpop.f32.mrf.mxu0
    %v99 = vadd.f32 %v76, %v98
    %100 = vdwg.mxu0
    %vm101 = vcmask 261120
    %102 = vst.msk [vmem:[#allocation2] sm:$0xff] %vm101, %v96
    %103 = vst.msk [vmem:[#allocation2 + $0x8] sm:$0xff] %vm101, %v99
    // Predicated region
    $region14: #{tpu_custom_call.1} parent=1 // pred_check
      _
    $region15: #{tpu_custom_call.1} parent=1 // pred_check_branch
      %105 = sbr.rel (0) target = $region17
    $region16: #{tpu_custom_call.1} parent=1 // pred_region
      %107 = vsyncadd [#allocation3], 0
      %s108 = sshll.u32 [#allocation2], 4
      %s109 = int_to_ptr.vmem [resolvable:$true] %s108
      %s110 = sshll.u32 %s3, 4
      %s111 = int_to_ptr.hbm [resolvable:$true] %s110
      %116 = dma.vmem_to_hbm [thread:$0]  %s109, 256, %s111, [#allocation3], 128, 128, 8
    $region17: #{tpu_custom_call.1} parent=1 // pred_fallthru
      _
    // Predicated region
    $region18: #{tpu_custom_call.1} parent=1 // pred_check
      _
    $region19: #{tpu_custom_call.1} parent=1 // pred_check_branch
      %118 = sbr.rel (0) target = $region21
    $region20: #{tpu_custom_call.1} parent=1 // pred_region
      %120 = dma.done [#allocation3], 256
    $region21: #{tpu_custom_call.1} parent=1 // pred_fallthru
      _
    %121 = vsyncpa [#allocation3], 1

</llo_original>
